<compile_context>
chip_gen: v7x
topology: tpu7x:2x2x1
jax: 0.10.0
libtpu: 0.0.40
codegen_flags: <defaults>
</compile_context>

<pallas_src>
import functools

import jax
import jax.numpy as jnp
from jax.experimental import pallas as pl
from jax.experimental.pallas import tpu as pltpu


# ---------------------------------------------------------------------------
# Small helpers
# ---------------------------------------------------------------------------

def _round_up(v, m):
    return -(-v // m) * m


def _buf_bytes(rows, cols, itemsize, sub=8):
    """Padded VMEM footprint of a (rows, cols) buffer."""
    return _round_up(rows, sub) * _round_up(cols, 128) * itemsize


def _vmem_cap_bytes():
    """Usable VMEM budget for this chip generation (~7/8 of physical)."""
    try:
        cap = int(pltpu.get_tpu_info().vmem_capacity_bytes)
    except Exception:
        cap = 64 << 20            # conservative fallback (v7x-sized)
    return max((cap * 7) // 8, 32 << 20)


def _vmem_limit(est_bytes, cap):
    """Padded estimate + one fixed margin, capped at the generation budget."""
    return int(min(max(est_bytes + (4 << 20), 16 << 20), cap))


def _pick_tile(n, requested, candidates=(512, 256, 128)):
    if requested is not None:
        assert n % requested == 0, "tile must divide N = H*W"
        return requested
    for cand in candidates:
        if n % cand == 0:
            return cand
    return n


# ---------------------------------------------------------------------------
# Kernel 1: fused theta|phi|g 1x1 projections (tile-wise, bf16 MXU)
# ---------------------------------------------------------------------------

def _qkv_proj_kernel(x_ref, wqkv_ref, bqkv_ref, th_ref, ph_ref, g_ref, *, icp):
    # x tile (1, TP, C) f32 ; wqkv (C, 3*ICp) bf16 ; bqkv (1, 3*ICp) f32.
    x = x_ref[0].astype(jnp.bfloat16)                                 # (TP, C)
    qkv = jnp.dot(x, wqkv_ref[...],
                  preferred_element_type=jnp.float32) + bqkv_ref[...]
    # ICp is a multiple of 128 -> lane-aligned slices, lane-dense stores.
    th_ref[0] = qkv[:, :icp].astype(jnp.bfloat16)
    ph_ref[0] = qkv[:, icp:2 * icp].astype(jnp.bfloat16)
    g_ref[0] = qkv[:, 2 * icp:].astype(jnp.bfloat16)


# ---------------------------------------------------------------------------
# Kernel 2a: single-pass softmax path (small N — typical NonLocal feature maps)
# ---------------------------------------------------------------------------

def _nonlocal_small_kernel(th_ref, ph_ref, g_ref, x_ref, ww_ref, wb_ref, o_ref):
    th = th_ref[0]                                                    # (TQ, ICp) bf16
    ph = ph_ref[0]                                                    # (N,  ICp) bf16
    gk = g_ref[0]                                                     # (N,  ICp) bf16

    # Scores contract over the shared ICp axis (== theta @ phi.T, no transpose).
    s = jax.lax.dot_general(th, ph, (((1,), (1,)), ((), ())),
                            preferred_element_type=jnp.float32)       # (TQ, N)
    m = jnp.max(s, axis=-1, keepdims=True)
    p = jnp.exp(s - m)
    denom = jnp.sum(p, axis=-1, keepdims=True)
    y = jnp.dot(p.astype(jnp.bfloat16), gk,
                preferred_element_type=jnp.float32)                    # (TQ, ICp)
    y = y * pl.reciprocal(denom, approx=True)
    w_y = jnp.dot(y.astype(jnp.bfloat16), ww_ref[...],
                  preferred_element_type=jnp.float32) + wb_ref[...]
    o_ref[0] = (w_y + x_ref[0]).astype(o_ref.dtype)


# ---------------------------------------------------------------------------
# Kernel 2b: flash (online-softmax) path for large N
# ---------------------------------------------------------------------------

def _nonlocal_flash_kernel(th_ref, ph_ref, g_ref, x_ref, ww_ref, wb_ref,
                           o_ref, m_s, l_s, acc_s):
    ki = pl.program_id(2)
    nk = pl.num_programs(2)

    @pl.when(ki == 0)
    def _init():
        m_s[...] = jnp.full_like(m_s, -jnp.inf)
        l_s[...] = jnp.zeros_like(l_s)
        acc_s[...] = jnp.zeros_like(acc_s)

    th = th_ref[0]                                                    # (TQ, ICp) bf16
    ph = ph_ref[0]                                                    # (TK, ICp) bf16
    gk = g_ref[0]                                                     # (TK, ICp) bf16

    s = jax.lax.dot_general(th, ph, (((1,), (1,)), ((), ())),
                            preferred_element_type=jnp.float32)       # (TQ, TK)

    m_prev = m_s[...]
    m_new = jnp.maximum(m_prev, jnp.max(s, axis=-1, keepdims=True))
    alpha = jnp.exp(m_prev - m_new)
    p = jnp.exp(s - m_new)
    l_s[...] = alpha * l_s[...] + jnp.sum(p, axis=-1, keepdims=True)
    acc_s[...] = alpha * acc_s[...] + jnp.dot(
        p.astype(jnp.bfloat16), gk, preferred_element_type=jnp.float32)
    m_s[...] = m_new

    # Output block keeps the same index across ki (accumulator revisit
    # semantics): written only once, at the last KV step.
    @pl.when(ki == nk - 1)
    def _finalize():
        y = acc_s[...] * pl.reciprocal(l_s[...], approx=True)          # (TQ, ICp)
        w_y = jnp.dot(y.astype(jnp.bfloat16), ww_ref[...],
                      preferred_element_type=jnp.float32) + wb_ref[...]
        o_ref[0] = (w_y + x_ref[0]).astype(o_ref.dtype)


# ---------------------------------------------------------------------------
# Wrapper (channels-last)
# ---------------------------------------------------------------------------

def nonlocal_forward_bnc(x_bnc, params, *, tq=None, tk=None, force_flash=False):
    """x_bnc: (B, N, C) float32 (channels-last).  Returns (B, N, C)."""
    B, N, C = x_bnc.shape
    IC, C_out = params["W_w"].shape
    assert C_out == C
    ICp = _round_up(max(IC, 1), 128)            # lane-dense inter-channel width
    pad_ic = ICp - IC
    cap = _vmem_cap_bytes()
    tq_req, tk_req = tq, tk

    # --- Pack / zero-pad weights to lane-dense ICp; bf16 for MXU operands.
    def pad_w(w):            # (C, IC) -> (C, ICp)
        return jnp.pad(w, ((0, 0), (0, pad_ic)))

    def pad_b(b):            # (1, IC) -> (1, ICp)
        return jnp.pad(b, ((0, 0), (0, pad_ic)))

    wqkv = jnp.concatenate(
        [pad_w(params["theta_w"]), pad_w(params["phi_w"]), pad_w(params["g_w"])],
        axis=1).astype(jnp.bfloat16)                                  # (C, 3*ICp)
    bqkv = jnp.concatenate(
        [pad_b(params["theta_b"]), pad_b(params["phi_b"]), pad_b(params["g_b"])],
        axis=1).astype(jnp.float32)                                   # (1, 3*ICp)
    ww = jnp.pad(params["W_w"], ((0, pad_ic), (0, 0))).astype(jnp.bfloat16)  # (ICp, C)
    wb = params["W_b"].astype(jnp.float32)                            # (1, C)

    # --- Stage 1: fused theta|phi|g projection, tiled over rows.
    tp = _pick_tile(N, None)
    proj_est = (2 * _buf_bytes(tp, C, 4)
                + 2 * (_buf_bytes(C, 3 * ICp, 2, sub=16) + _buf_bytes(1, 3 * ICp, 4))
                + 3 * 2 * _buf_bytes(tp, ICp, 2, sub=16)
                + _buf_bytes(tp, 3 * ICp, 4) + _buf_bytes(tp, 3 * ICp, 2))
    theta, phi, g = pl.pallas_call(
        functools.partial(_qkv_proj_kernel, icp=ICp),
        out_shape=tuple(jax.ShapeDtypeStruct((B, N, ICp), jnp.bfloat16)
                        for _ in range(3)),
        grid_spec=pltpu.PrefetchScalarGridSpec(
            num_scalar_prefetch=0,
            grid=(B, N // tp),
            in_specs=[
                pl.BlockSpec((1, tp, C), lambda b, i: (b, i, 0)),
                pl.BlockSpec((C, 3 * ICp), lambda b, i: (0, 0)),
                pl.BlockSpec((1, 3 * ICp), lambda b, i: (0, 0)),
            ],
            out_specs=tuple(pl.BlockSpec((1, tp, ICp), lambda b, i: (b, i, 0))
                            for _ in range(3)),
        ),
        compiler_params=pltpu.CompilerParams(
            dimension_semantics=("parallel", "parallel"),
            vmem_limit_bytes=_vmem_limit(proj_est, cap),
        ),
    )(x_bnc, wqkv, bqkv)

    # --- Stage 2: attention + output projection + residual.
    tq_s = _pick_tile(N, tq_req)
    small_est = (2 * _buf_bytes(tq_s, ICp, 2, sub=16)                 # theta tile
                 + 2 * 2 * _buf_bytes(N, ICp, 2, sub=16)              # phi + g resident
                 + 4 * _buf_bytes(tq_s, C, 4)                         # x tile + out tile
                 + 2 * (_buf_bytes(ICp, C, 2, sub=16) + _buf_bytes(1, C, 4))
                 + 3 * _buf_bytes(tq_s, N, 4)                         # s / p temporaries
                 + _buf_bytes(tq_s, ICp, 4))                          # y

    if (not force_flash) and small_est + (4 << 20) <= cap:
        # ---- Small-N fast path: single-pass softmax, no KV grid axis.
        return pl.pallas_call(
            _nonlocal_small_kernel,
            out_shape=jax.ShapeDtypeStruct((B, N, C), x_bnc.dtype),
            grid_spec=pltpu.PrefetchScalarGridSpec(
                num_scalar_prefetch=0,
                grid=(B, N // tq_s),
                in_specs=[
                    pl.BlockSpec((1, tq_s, ICp), lambda b, qi: (b, qi, 0)),
                    pl.BlockSpec((1, N, ICp), lambda b, qi: (b, 0, 0)),
                    pl.BlockSpec((1, N, ICp), lambda b, qi: (b, 0, 0)),
                    pl.BlockSpec((1, tq_s, C), lambda b, qi: (b, qi, 0)),
                    pl.BlockSpec((ICp, C), lambda b, qi: (0, 0)),
                    pl.BlockSpec((1, C), lambda b, qi: (0, 0)),
                ],
                out_specs=pl.BlockSpec((1, tq_s, C), lambda b, qi: (b, qi, 0)),
            ),
            compiler_params=pltpu.CompilerParams(
                dimension_semantics=("parallel", "parallel"),
                vmem_limit_bytes=_vmem_limit(small_est, cap),
            ),
        )(theta, phi, g, x_bnc, ww, wb)

    # ---- Flash (online-softmax) path.
    big_tiles = cap >= (96 << 20)          # v5e/v6e: larger tiles amortize overhead
    cands = (1024, 512, 256, 128) if big_tiles else (512, 256, 128)
    tq_f = _pick_tile(N, tq_req, candidates=cands)
    tk_f = _pick_tile(N, tk_req, candidates=cands)
    flash_est = (2 * _buf_bytes(tq_f, ICp, 2, sub=16)
                 + 2 * 2 * _buf_bytes(tk_f, ICp, 2, sub=16)
                 + 4 * _buf_bytes(tq_f, C, 4)
                 + 2 * (_buf_bytes(ICp, C, 2, sub=16) + _buf_bytes(1, C, 4))
                 + 3 * _buf_bytes(tq_f, tk_f, 4)
                 + 2 * _buf_bytes(tq_f, 1, 4) + 2 * _buf_bytes(tq_f, ICp, 4))
    return pl.pallas_call(
        _nonlocal_flash_kernel,
        out_shape=jax.ShapeDtypeStruct((B, N, C), x_bnc.dtype),
        grid_spec=pltpu.PrefetchScalarGridSpec(
            num_scalar_prefetch=0,
            grid=(B, N // tq_f, N // tk_f),
            in_specs=[
                pl.BlockSpec((1, tq_f, ICp), lambda b, qi, ki: (b, qi, 0)),
                pl.BlockSpec((1, tk_f, ICp), lambda b, qi, ki: (b, ki, 0)),
                pl.BlockSpec((1, tk_f, ICp), lambda b, qi, ki: (b, ki, 0)),
                pl.BlockSpec((1, tq_f, C), lambda b, qi, ki: (b, qi, 0)),
                pl.BlockSpec((ICp, C), lambda b, qi, ki: (0, 0)),
                pl.BlockSpec((1, C), lambda b, qi, ki: (0, 0)),
            ],
            out_specs=pl.BlockSpec((1, tq_f, C), lambda b, qi, ki: (b, qi, 0)),
            scratch_shapes=[
                pltpu.VMEM((tq_f, 1), jnp.float32),     # running max
                pltpu.VMEM((tq_f, 1), jnp.float32),     # running sum
                pltpu.VMEM((tq_f, ICp), jnp.float32),   # output accumulator
            ],
        ),
        compiler_params=pltpu.CompilerParams(
            # theta/phi/g are per-tile inputs (no cross-qi scratch reuse), so
            # both batch and query axes are "parallel" (v7x 2-TC sharding at
            # small batch); only the KV accumulation axis is "arbitrary".
            dimension_semantics=("parallel", "parallel", "arbitrary"),
            vmem_limit_bytes=_vmem_limit(flash_est, cap),
        ),
    )(theta, phi, g, x_bnc, ww, wb)


def nonlocal_forward(x_nchw, params, *, tq=None, tk=None, force_flash=False):
    """x_nchw: (B, C, H, W) float32; params: dict of weights (see init_params)."""
    B, C, H, W = x_nchw.shape
    # NCHW -> (B, N, C).  Channels-last callers can use nonlocal_forward_bnc
    # directly and skip both layout passes.
    x_bnc = jnp.transpose(x_nchw, (0, 2, 3, 1)).reshape(B, H * W, C)
    out = nonlocal_forward_bnc(x_bnc, params, tq=tq, tk=tk, force_flash=force_flash)
    return jnp.transpose(out.reshape(B, H, W, C), (0, 3, 1, 2))


# ---------------------------------------------------------------------------
# Parameters & pure-JAX reference
# ---------------------------------------------------------------------------

def init_params(key, in_channels, inter_channels=None):
    if inter_channels is None:
        inter_channels = in_channels // 4
        if inter_channels == 0:
            inter_channels = 1
    C, IC = in_channels, inter_channels
    ks = jax.random.split(key, 7)
    scale = 1.0 / jnp.sqrt(jnp.float32(C))
    params = {
        # (C_in, C_out) matrices == 1x1 conv weights transposed
        "g_w": jax.random.uniform(ks[0], (C, IC), jnp.float32, -scale, scale),
        "g_b": jax.random.uniform(ks[1], (1, IC), jnp.float32, -scale, scale),
        "theta_w": jax.random.uniform(ks[2], (C, IC), jnp.float32, -scale, scale),
        "theta_b": jax.random.uniform(ks[3], (1, IC), jnp.float32, -scale, scale),
        "phi_w": jax.random.uniform(ks[4], (C, IC), jnp.float32, -scale, scale),
        "phi_b": jax.random.uniform(ks[5], (1, IC), jnp.float32, -scale, scale),
        # W.weight is zero-initialized in the module (bn_layer=False branch);
        # its bias keeps the default (random) init.
        "W_w": jnp.zeros((IC, C), jnp.float32),
        "W_b": jax.random.uniform(ks[6], (1, C), jnp.float32,
                                  -1.0 / jnp.sqrt(jnp.float32(IC)),
                                  1.0 / jnp.sqrt(jnp.float32(IC))),
    }
    return params


def nonlocal_reference(x_nchw, params):
    """Pure-JAX reference mirroring the PyTorch forward."""
    B, C, H, W = x_nchw.shape
    N = H * W
    x_bnc = jnp.transpose(x_nchw, (0, 2, 3, 1)).reshape(B, N, C)
    g_x = x_bnc @ params["g_w"] + params["g_b"]
    theta = x_bnc @ params["theta_w"] + params["theta_b"]
    phi = x_bnc @ params["phi_w"] + params["phi_b"]
    f = jnp.einsum("bnc,bmc->bnm", theta, phi)
    p = jax.nn.softmax(f, axis=-1)
    y = jnp.einsum("bnm,bmc->bnc", p, g_x)
    w_y = y @ params["W_w"] + params["W_b"]
    z = w_y + x_bnc
    return jnp.transpose(z.reshape(B, H, W, C), (0, 3, 1, 2))


if __name__ == "__main__":
    B, C, H, W = 2, 8, 16, 16            # N = 256
    key = jax.random.PRNGKey(0)
    kx, kp, kw = jax.random.split(key, 3)
    x = jax.random.normal(kx, (B, C, H, W), jnp.float32)
    params = init_params(kp, in_channels=C)

    # 1) Module-faithful params (W_w zero-initialized as in the PyTorch spec);
    #    exercises the small-N single-pass path.
    out = jax.block_until_ready(nonlocal_forward(x, params))
    ref = nonlocal_reference(x, params)
    assert out.shape == (B, C, H, W)
    assert float(jnp.max(jnp.abs(out - ref))) < 5e-2, "mismatch vs reference (W=0)"

    # 2) Non-zero W weight to exercise the full attention contribution
    #    (the spec's zero init would otherwise hide softmax / y errors).
    params_t = dict(params)
    params_t["W_w"] = 0.5 * jax.random.normal(kw, params["W_w"].shape, jnp.float32)
    out_t = jax.block_until_ready(nonlocal_forward(x, params_t))
    ref_t = nonlocal_reference(x, params_t)
    assert float(jnp.max(jnp.abs(out_t - ref_t))) < 5e-2, "mismatch (small path)"

    # 3) Force the flash (online-softmax) path so both kernels are exercised.
    out_f = jax.block_until_ready(
        nonlocal_forward(x, params_t, tq=128, tk=128, force_flash=True))
    assert float(jnp.max(jnp.abs(out_f - ref_t))) < 5e-2, "mismatch (flash path)"

    print("KERNEL_OK")
</pallas_src>

<mosaic_0001>
module attributes {stable_mosaic.version = 11 : i64} {
  func.func @_qkv_proj_kernel(%arg0: i32, %arg1: i32, %arg2: memref<1x256x8xf32, #tpu.memory_space<vmem>>, %arg3: memref<8x384xbf16, #tpu.memory_space<vmem>>, %arg4: memref<1x384xf32, #tpu.memory_space<vmem>>, %arg5: memref<1x256x128xbf16, #tpu.memory_space<vmem>>, %arg6: memref<1x256x128xbf16, #tpu.memory_space<vmem>>, %arg7: memref<1x256x128xbf16, #tpu.memory_space<vmem>>) attributes {dimension_semantics = [#tpu.dimension_semantics<parallel>, #tpu.dimension_semantics<parallel>], iteration_bounds = array<i64: 2, 1>, scalar_prefetch = 0 : i64, scratch_operands = 0 : i64, tpu.core_type = #tpu.core_type<tc>, window_params = [{transform_indices = @transform_0, window_bounds = array<i64: 1, 256, 8>}, {pipeline_mode = #tpu.pipeline_mode<synchronous>, transform_indices = @transform_1, window_bounds = array<i64: 8, 384>}, {pipeline_mode = #tpu.pipeline_mode<synchronous>, transform_indices = @transform_2, window_bounds = array<i64: 1, 384>}, {transform_indices = @transform_3, window_bounds = array<i64: 1, 256, 128>}, {transform_indices = @transform_4, window_bounds = array<i64: 1, 256, 128>}, {transform_indices = @transform_5, window_bounds = array<i64: 1, 256, 128>}]} {
    %c0 = arith.constant 0 : index
    %c0_0 = arith.constant 0 : index
    %c0_1 = arith.constant 0 : index
    %0 = vector.load %arg2[%c0, %c0_0, %c0_1] : memref<1x256x8xf32, #tpu.memory_space<vmem>>, vector<1x256x8xf32>
    %1 = vector.shape_cast %0 : vector<1x256x8xf32> to vector<256x8xf32>
    %2 = arith.truncf %1 : vector<256x8xf32> to vector<256x8xbf16>
    %c0_2 = arith.constant 0 : index
    %c0_3 = arith.constant 0 : index
    %3 = vector.load %arg3[%c0_2, %c0_3] : memref<8x384xbf16, #tpu.memory_space<vmem>>, vector<8x384xbf16>
    %cst = arith.constant dense<0.000000e+00> : vector<256x384xf32>
    %4 = tpu.matmul %2, %3, %cst {dimension_numbers = #tpu.dot_dimension_numbers<[1], [0], [0], [1], [0, 0, 1, 1], [], []>} : vector<256x8xbf16>, vector<8x384xbf16>, vector<256x384xf32> -> vector<256x384xf32>
    %c0_4 = arith.constant 0 : index
    %c0_5 = arith.constant 0 : index
    %5 = vector.load %arg4[%c0_4, %c0_5] : memref<1x384xf32, #tpu.memory_space<vmem>>, vector<1x384xf32>
    %6 = vector.broadcast %5 : vector<1x384xf32> to vector<256x384xf32>
    %7 = arith.addf %4, %6 : vector<256x384xf32>
    %8 = vector.extract_strided_slice %7 {offsets = [0, 0], sizes = [256, 128], strides = [1, 1]} : vector<256x384xf32> to vector<256x128xf32>
    %9 = arith.truncf %8 : vector<256x128xf32> to vector<256x128xbf16>
    %c0_6 = arith.constant 0 : index
    %c0_7 = arith.constant 0 : index
    %c0_8 = arith.constant 0 : index
    %10 = vector.load %arg5[%c0_6, %c0_7, %c0_8] : memref<1x256x128xbf16, #tpu.memory_space<vmem>>, vector<1x256x128xbf16>
    %11 = vector.shape_cast %10 : vector<1x256x128xbf16> to vector<256x128xbf16>
    %12 = vector.shape_cast %9 : vector<256x128xbf16> to vector<1x256x128xbf16>
    tpu.vector_store %arg5[%c0_6, %c0_7, %c0_8], %12 {strides = array<i32>} : memref<1x256x128xbf16, #tpu.memory_space<vmem>>, vector<1x256x128xbf16>,
    %13 = vector.extract_strided_slice %7 {offsets = [0, 128], sizes = [256, 128], strides = [1, 1]} : vector<256x384xf32> to vector<256x128xf32>
    %14 = arith.truncf %13 : vector<256x128xf32> to vector<256x128xbf16>
    %c0_9 = arith.constant 0 : index
    %c0_10 = arith.constant 0 : index
    %c0_11 = arith.constant 0 : index
    %15 = vector.load %arg6[%c0_9, %c0_10, %c0_11] : memref<1x256x128xbf16, #tpu.memory_space<vmem>>, vector<1x256x128xbf16>
    %16 = vector.shape_cast %15 : vector<1x256x128xbf16> to vector<256x128xbf16>
    %17 = vector.shape_cast %14 : vector<256x128xbf16> to vector<1x256x128xbf16>
    tpu.vector_store %arg6[%c0_9, %c0_10, %c0_11], %17 {strides = array<i32>} : memref<1x256x128xbf16, #tpu.memory_space<vmem>>, vector<1x256x128xbf16>,
    %18 = vector.extract_strided_slice %7 {offsets = [0, 256], sizes = [256, 128], strides = [1, 1]} : vector<256x384xf32> to vector<256x128xf32>
    %19 = arith.truncf %18 : vector<256x128xf32> to vector<256x128xbf16>
    %c0_12 = arith.constant 0 : index
    %c0_13 = arith.constant 0 : index
    %c0_14 = arith.constant 0 : index
    %20 = vector.load %arg7[%c0_12, %c0_13, %c0_14] : memref<1x256x128xbf16, #tpu.memory_space<vmem>>, vector<1x256x128xbf16>
    %21 = vector.shape_cast %20 : vector<1x256x128xbf16> to vector<256x128xbf16>
    %22 = vector.shape_cast %19 : vector<256x128xbf16> to vector<1x256x128xbf16>
    tpu.vector_store %arg7[%c0_12, %c0_13, %c0_14], %22 {strides = array<i32>} : memref<1x256x128xbf16, #tpu.memory_space<vmem>>, vector<1x256x128xbf16>,
    return
  }
  func.func @transform_0(%arg0: i32, %arg1: i32) -> (i32, i32, i32) {
    %c0_i32 = arith.constant 0 : i32
    %c0_i32_0 = arith.constant 0 : i32
    return %arg0, %arg1, %c0_i32 : i32, i32, i32
  }
  func.func @transform_1(%arg0: i32, %arg1: i32) -> (i32, i32) {
    %c0_i32 = arith.constant 0 : i32
    %c0_i32_0 = arith.constant 0 : i32
    %c0_i32_1 = arith.constant 0 : i32
    return %c0_i32, %c0_i32_0 : i32, i32
  }
  func.func @transform_2(%arg0: i32, %arg1: i32) -> (i32, i32) {
    %c0_i32 = arith.constant 0 : i32
    %c0_i32_0 = arith.constant 0 : i32
    %c0_i32_1 = arith.constant 0 : i32
    return %c0_i32, %c0_i32_0 : i32, i32
  }
  func.func @transform_3(%arg0: i32, %arg1: i32) -> (i32, i32, i32) {
    %c0_i32 = arith.constant 0 : i32
    %c0_i32_0 = arith.constant 0 : i32
    return %arg0, %arg1, %c0_i32 : i32, i32, i32
  }
  func.func @transform_4(%arg0: i32, %arg1: i32) -> (i32, i32, i32) {
    %c0_i32 = arith.constant 0 : i32
    %c0_i32_0 = arith.constant 0 : i32
    return %arg0, %arg1, %c0_i32 : i32, i32, i32
  }
  func.func @transform_5(%arg0: i32, %arg1: i32) -> (i32, i32, i32) {
    %c0_i32 = arith.constant 0 : i32
    %c0_i32_0 = arith.constant 0 : i32
    return %arg0, %arg1, %c0_i32 : i32, i32, i32
  }
}

</mosaic_0001>

<llo_original>
// kernel: tpu_custom_call.1
$region0: #{tpu_custom_call.1}
  #allocation0 [shape = 'u32[]', space=smem, size = 0x4, offset = 0x4, fixed_abs, tag = 'smem constant byte address 0x4 - core index']
  #allocation1 [shape = 'u32[144,128]{1,0:T(1,128)}', space=vmem, size = 0x12000, scoped, tag = 'internal scratch']
  %s0 = inlined_call_operand.vmem [shape: f32[2,256,8], index: 0, kind: input, shape index: {}]
  %s1 = inlined_call_operand.vmem [shape: bf16[8,384], index: 1, kind: input, shape index: {}]
  %s2 = inlined_call_operand.vmem [shape: f32[1,384], index: 2, kind: input, shape index: {}]
  %s3 = inlined_call_operand.hbm [shape: bf16[2,256,128], index: 3, kind: output, shape index: {0}]
  %s4 = inlined_call_operand.hbm [shape: bf16[2,256,128], index: 4, kind: output, shape index: {1}]
  %s5 = inlined_call_operand.hbm [shape: bf16[2,256,128], index: 5, kind: output, shape index: {2}]
  %6 = xla_tuple %s3, %s4, %s5
  %s7 = sld [smem:[#allocation0]]
  $region61: #{tpu_custom_call.1} parent=0
    _
  %s9 = ssub.s32 1, %s7
  %s10 = scalar_select 0, %s9, %s7
  $region1: #{tpu_custom_call.1} parent=0
    #allocation2 [shape = 'u8[131072]{0}', space=vmem, size = 0x20000, scoped, tag = 'output window, operand 0']
    #allocation3 [shape = 's32[2]{0}', space=sflag, size = 0x8, scoped, tag = 'scoped memory for tpu_custom_call.1']
    #allocation4 [shape = 'u8[131072]{0}', space=vmem, size = 0x20000, scoped, tag = 'output window, operand 1']
    #allocation5 [shape = 's32[2]{0}', space=sflag, size = 0x8, scoped, tag = 'scoped memory for tpu_custom_call.1']
    #allocation6 [shape = 'u8[131072]{0}', space=vmem, size = 0x20000, scoped, tag = 'output window, operand 2']
    %11 = vsyncpa [#allocation3], 0
    %s12 = scalar_lea.sflag [#allocation3], 1
    %13 = vsyncpa %s12, 0
    %14 = vsyncpa [#allocation5], 0
    %s15 = scalar_lea.sflag [#allocation5], 1
    %16 = vsyncpa %s15, 0
    loop: start=0, step=1, limit=4
    $region2: #{tpu_custom_call.1} parent=1 // loop_pre_header
      _
    $region3: #{tpu_custom_call.1} parent=1 // loop_header
      %s18 = sphi 0, %s22
      %p19 = scmp.ge.s32.totalorder %s18, 4
      %s25 = sphi 0, %s37
      %s26 = sphi 0, %s33
      %s27 = sphi 0, %s25
      %s28 = sphi 0, %s26
      %s29 = sphi 0, %s27
      %s30 = sphi 0, %s28
      %s42 = sphi 0, %s44
      %s45 = sphi 0, %s42
      %s46 = sphi 0, %s45
      %s62 = sphi 0, %s46
      %s66 = sphi 0, %s66
      %s68 = sphi 0, %s66
      %s69 = sphi 0, %s68
      %s83 = sphi 0, %s69
      %s87 = sphi 0, %s87
      %s89 = sphi 0, %s87
      %s90 = sphi 0, %s89
      %s104 = sphi 0, %s90
      %s112 = sphi 0, %s114
      %s115 = sphi 0, %s112
      %s116 = sphi 0, %s115
      %s132 = sphi 0, %s116
      %s140 = sphi 0, %s142
      %s143 = sphi 0, %s140
      %s144 = sphi 0, %s143
      %s160 = sphi 0, %s144
      %s168 = sphi 0, %s170
      %s171 = sphi 0, %s168
      %s172 = sphi 0, %s171
      %s188 = sphi 0, %s172
    $region4: #{tpu_custom_call.1} parent=1 // loop_header_branch
      %21 = sbr.rel (%p19) target = $region8
    $region5: #{tpu_custom_call.1} parent=1 // loop_body
      %s23 = ssub.s32 %s18, 1
      %s24 = ssub.s32 %s18, 2
      %s31 = sadd.s32 1, %s26
      %p32 = scmp.ge.s32.totalorder %s31, 1
      %s33 = scalar_select %p32, 0, %s31
      %s34 = sadd.s32 1, %s25
      %s35 = scalar_select %p32, %s34, %s25
      %p36 = scmp.ge.s32.totalorder %s35, 2
      %s37 = scalar_select %p36, 0, %s35
      %s38 = ssub.s32 %s25, %s37
      %s39 = ssub.s32 %s26, %s33
      %s40 = sor.u32 %s38, %s39
      %p41 = scmp.eq.s32.totalorder %s40, 0
      %s43 = sadd.s32 %s42, 1
      %s44 = scalar_select %p41, %s42, %s43
      %p47 = pneg %p41
      %p48 = scmp.eq.s32.totalorder %s18, 1
      %p49 = por %p47, %p48
      %p50 = scmp.ne.s32.totalorder %s42, %s45
      %p51 = scmp.eq.s32.totalorder %s18, 0
      %p52 = por %p50, %p51
      %p53 = scmp.ne.s32.totalorder %s42, %s45
      %p54 = scmp.eq.s32.totalorder %s23, 1
      %p55 = por %p53, %p54
      %p56 = scmp.ne.s32.totalorder %s45, %s46
      %p57 = scmp.eq.s32.totalorder %s23, 0
      %p58 = por %p56, %p57
      %p59 = scmp.ne.s32.totalorder %s45, %s46
      %p60 = scmp.eq.s32.totalorder %s24, 1
      %p61 = por %p59, %p60
      %p63 = scmp.ne.s32.totalorder %s46, %s62
      %p64 = scmp.eq.s32.totalorder %s24, 0
      %p65 = por %p63, %p64
      %s67 = sadd.s32 %s66, 1
      %p70 = scmp.eq.s32.totalorder %s18, 1
      %p71 = scmp.ne.s32.totalorder %s66, %s68
      %p72 = scmp.eq.s32.totalorder %s18, 0
      %p73 = por %p71, %p72
      %p74 = scmp.ne.s32.totalorder %s66, %s68
      %p75 = scmp.eq.s32.totalorder %s23, 1
      %p76 = por %p74, %p75
      %p77 = scmp.ne.s32.totalorder %s68, %s69
      %p78 = scmp.eq.s32.totalorder %s23, 0
      %p79 = por %p77, %p78
      %p80 = scmp.ne.s32.totalorder %s68, %s69
      %p81 = scmp.eq.s32.totalorder %s24, 1
      %p82 = por %p80, %p81
      %p84 = scmp.ne.s32.totalorder %s69, %s83
      %p85 = scmp.eq.s32.totalorder %s24, 0
      %p86 = por %p84, %p85
      %s88 = sadd.s32 %s87, 1
      %p91 = scmp.eq.s32.totalorder %s18, 1
      %p92 = scmp.ne.s32.totalorder %s87, %s89
      %p93 = scmp.eq.s32.totalorder %s18, 0
      %p94 = por %p92, %p93
      %p95 = scmp.ne.s32.totalorder %s87, %s89
      %p96 = scmp.eq.s32.totalorder %s23, 1
      %p97 = por %p95, %p96
      %p98 = scmp.ne.s32.totalorder %s89, %s90
      %p99 = scmp.eq.s32.totalorder %s23, 0
      %p100 = por %p98, %p99
      %p101 = scmp.ne.s32.totalorder %s89, %s90
      %p102 = scmp.eq.s32.totalorder %s24, 1
      %p103 = por %p101, %p102
      %p105 = scmp.ne.s32.totalorder %s90, %s104
      %p106 = scmp.eq.s32.totalorder %s24, 0
      %p107 = por %p105, %p106
      %s108 = ssub.s32 %s25, %s37
      %s109 = ssub.s32 %s26, %s33
      %s110 = sor.u32 %s108, %s109
      %p111 = scmp.eq.s32.totalorder %s110, 0
      %s113 = sadd.s32 %s112, 1
      %s114 = scalar_select %p111, %s112, %s113
      %p117 = pneg %p111
      %p118 = scmp.eq.s32.totalorder %s18, 1
      %p119 = por %p117, %p118
      %p120 = scmp.ne.s32.totalorder %s112, %s115
      %p121 = scmp.eq.s32.totalorder %s18, 0
      %p122 = por %p120, %p121
      %p123 = scmp.ne.s32.totalorder %s112, %s115
      %p124 = scmp.eq.s32.totalorder %s23, 1
      %p125 = por %p123, %p124
      %p126 = scmp.ne.s32.totalorder %s115, %s116
      %p127 = scmp.eq.s32.totalorder %s23, 0
      %p128 = por %p126, %p127
      %p129 = scmp.ne.s32.totalorder %s115, %s116
      %p130 = scmp.eq.s32.totalorder %s24, 1
      %p131 = por %p129, %p130
      %p133 = scmp.ne.s32.totalorder %s116, %s132
      %p134 = scmp.eq.s32.totalorder %s24, 0
      %p135 = por %p133, %p134
      %s136 = ssub.s32 %s25, %s37
      %s137 = ssub.s32 %s26, %s33
      %s138 = sor.u32 %s136, %s137
      %p139 = scmp.eq.s32.totalorder %s138, 0
      %s141 = sadd.s32 %s140, 1
      %s142 = scalar_select %p139, %s140, %s141
      %p145 = pneg %p139
      %p146 = scmp.eq.s32.totalorder %s18, 1
      %p147 = por %p145, %p146
      %p148 = scmp.ne.s32.totalorder %s140, %s143
      %p149 = scmp.eq.s32.totalorder %s18, 0
      %p150 = por %p148, %p149
      %p151 = scmp.ne.s32.totalorder %s140, %s143
      %p152 = scmp.eq.s32.totalorder %s23, 1
      %p153 = por %p151, %p152
      %p154 = scmp.ne.s32.totalorder %s143, %s144
      %p155 = scmp.eq.s32.totalorder %s23, 0
      %p156 = por %p154, %p155
      %p157 = scmp.ne.s32.totalorder %s143, %s144
      %p158 = scmp.eq.s32.totalorder %s24, 1
      %p159 = por %p157, %p158
      %p161 = scmp.ne.s32.totalorder %s144, %s160
      %p162 = scmp.eq.s32.totalorder %s24, 0
      %p163 = por %p161, %p162
      %s164 = ssub.s32 %s25, %s37
      %s165 = ssub.s32 %s26, %s33
      %s166 = sor.u32 %s164, %s165
      %p167 = scmp.eq.s32.totalorder %s166, 0
      %s169 = sadd.s32 %s168, 1
      %s170 = scalar_select %p167, %s168, %s169
      %p173 = pneg %p167
      %p174 = scmp.eq.s32.totalorder %s18, 1
      %p175 = por %p173, %p174
      %p176 = scmp.ne.s32.totalorder %s168, %s171
      %p177 = scmp.eq.s32.totalorder %s18, 0
      %p178 = por %p176, %p177
      %p179 = scmp.ne.s32.totalorder %s168, %s171
      %p180 = scmp.eq.s32.totalorder %s23, 1
      %p181 = por %p179, %p180
      %p182 = scmp.ne.s32.totalorder %s171, %s172
      %p183 = scmp.eq.s32.totalorder %s23, 0
      %p184 = por %p182, %p183
      %p185 = scmp.ne.s32.totalorder %s171, %s172
      %p186 = scmp.eq.s32.totalorder %s24, 1
      %p187 = por %p185, %p186
      %p189 = scmp.ne.s32.totalorder %s172, %s188
      %p190 = scmp.eq.s32.totalorder %s24, 0
      %p191 = por %p189, %p190
      %p192 = scmp.le.s32.totalorder 1, %s18
      %p193 = scmp.lt.s32.totalorder %s18, 3
      %p194 = pnand %p192, %p193
      %p195 = pneg %p194
      // Predicated region
      $region9: #{tpu_custom_call.1} parent=5 // pred_check
        _
      $region10: #{tpu_custom_call.1} parent=5 // pred_check_branch
        %197 = sbr.rel (%p194) target = $region12
      $region11: #{tpu_custom_call.1} parent=5 // pred_region
        %s198 = ssub.s32 %s18, 1
        // Predicated region
        $region13: #{tpu_custom_call.1} parent=11 // pred_check
          %p199 = pneg %p79
        $region14: #{tpu_custom_call.1} parent=11 // pred_check_branch
          %201 = sbr.rel (%p199) target = $region16
        $region15: #{tpu_custom_call.1} parent=11 // pred_region
          _
        $region16: #{tpu_custom_call.1} parent=11 // pred_fallthru
          _
        // Predicated region
        $region17: #{tpu_custom_call.1} parent=11 // pred_check
          %p202 = pneg %p100
        $region18: #{tpu_custom_call.1} parent=11 // pred_check_branch
          %204 = sbr.rel (%p202) target = $region20
        $region19: #{tpu_custom_call.1} parent=11 // pred_region
          _
        $region20: #{tpu_custom_call.1} parent=11 // pred_fallthru
          _
      $region12: #{tpu_custom_call.1} parent=5 // pred_fallthru
        _
      %p205 = scmp.lt.s32.totalorder %s18, 2
      // Predicated region
      $region21: #{tpu_custom_call.1} parent=5 // pred_check
        %p206 = pneg %p205
      $region22: #{tpu_custom_call.1} parent=5 // pred_check_branch
        %208 = sbr.rel (%p206) target = $region24
      $region23: #{tpu_custom_call.1} parent=5 // pred_region
        // Predicated region
        $region25: #{tpu_custom_call.1} parent=23 // pred_check
          %p209 = pneg %p52
        $region26: #{tpu_custom_call.1} parent=23 // pred_check_branch
          %211 = sbr.rel (%p209) target = $region28
        $region27: #{tpu_custom_call.1} parent=23 // pred_region
          %s212 = smul.u32 32, %s26
          %p213 = scmp.lt.s32.totalorder %s25, 1
          %s214 = scalar_select %p213, %s25, 1
          %p215 = scmp.lt.s32.totalorder %s212, 31
          %s216 = scalar_select %p215, %s212, 31
          %s217 = smul.addr %s214, 32
          %s218 = sadd.s32 %s216, %s217
          %s219 = smul.addr %s218, 8
          %s220 = scalar_lea.vmem %s0, %s219
          %s221 = smul.u32 32, %s26
        $region28: #{tpu_custom_call.1} parent=23 // pred_fallthru
          _
      $region24: #{tpu_custom_call.1} parent=5 // pred_fallthru
        _
      %p222 = scmp.le.s32.totalorder 1, %s18
      %p223 = scmp.lt.s32.totalorder %s18, 3
      %p224 = pnand %p222, %p223
      %p225 = pneg %p224
      // Predicated region
      $region29: #{tpu_custom_call.1} parent=5 // pred_check
        _
      $region30: #{tpu_custom_call.1} parent=5 // pred_check_branch
        %227 = sbr.rel (%p224) target = $region32
      $region31: #{tpu_custom_call.1} parent=5 // pred_region
        %s228 = ssub.s32 %s18, 1
        %s229 = smul.u32 32, %s28
        %p230 = scmp.lt.s32.totalorder %s27, 1
        %s231 = scalar_select %p230, %s27, 1
        %p232 = scmp.lt.s32.totalorder %s229, 31
        %s233 = scalar_select %p232, %s229, 31
        %s234 = smul.addr %s231, 32
        %s235 = sadd.s32 %s233, %s234
        %s236 = smul.addr %s235, 8
        %s237 = scalar_lea.vmem %s0, %s236
        %p238 = pneg %p58
        %p239 = pneg %p55
        %p240 = pneg %p79
        %p241 = pneg %p76
        %p242 = pneg %p100
        %p243 = pneg %p97
        %p244 = pneg %p128
        %p245 = pneg %p125
        %s246 = sand.u32 %s115, 1
        %s247 = scalar_lea.sflag [#allocation3], %s246
        %s248 = sand.u32 %s115, 1
        %s249 = smul.addr %s248, 128
        %s250 = scalar_lea.vmem [#allocation2], %s249
        %p251 = pneg %p156
        %p252 = pneg %p153
        %s253 = sand.u32 %s23, 1
        %s254 = scalar_lea.sflag [#allocation5], %s253
        %s255 = sand.u32 %s143, 1
        %s256 = smul.addr %s255, 128
        %s257 = scalar_lea.vmem [#allocation4], %s256
        %p258 = pneg %p184
        %p259 = pneg %p181
        %s260 = sand.u32 %s23, 1
        %s261 = scalar_lea.sflag [#allocation5], %s260
        %s262 = sand.u32 %s171, 1
        %s263 = smul.addr %s262, 128
        %s264 = scalar_lea.vmem [#allocation6], %s263
        %s265 = smul.u32 32, %s28
        %p266 = scmp.lt.s32.totalorder %s27, 1
        %s267 = scalar_select %p266, %s27, 1
        %p268 = scmp.lt.s32.totalorder %s265, 31
        %s269 = scalar_select %p268, %s265, 31
        %s270 = smul.addr %s267, 32
        %s271 = sadd.s32 %s269, %s270
        %s272 = smul.addr %s271, 8
        %s273 = scalar_lea.vmem %s0, %s272
        %s274 = smul.u32 32, %s28
        %s275 = smul.u32 32, %s28
        %s276 = smul.u32 32, %s28
        %s277 = smul.u32 32, %s28
        %v279 = vld [vmem:[%s273] sm:$0xff]
        %v280 = vld [vmem:[%s273 + $0x8] sm:$0xff]
        %v281 = vld [vmem:[%s273 + $0x10] sm:$0xff]
        %v282 = vld [vmem:[%s273 + $0x18] sm:$0xff]
        %v283 = vld [vmem:[%s273 + $0x20] sm:$0xff]
        %v284 = vld [vmem:[%s273 + $0x28] sm:$0xff]
        %v285 = vld [vmem:[%s273 + $0x30] sm:$0xff]
        %v286 = vld [vmem:[%s273 + $0x38] sm:$0xff]
        %v287 = vld [vmem:[%s273 + $0x40] sm:$0xff]
        %v288 = vld [vmem:[%s273 + $0x48] sm:$0xff]
        %v289 = vld [vmem:[%s273 + $0x50] sm:$0xff]
        %v290 = vld [vmem:[%s273 + $0x58] sm:$0xff]
        %v291 = vld [vmem:[%s273 + $0x60] sm:$0xff]
        %v292 = vld [vmem:[%s273 + $0x68] sm:$0xff]
        %v293 = vld [vmem:[%s273 + $0x70] sm:$0xff]
        %v294 = vld [vmem:[%s273 + $0x78] sm:$0xff]
        %v295 = vld [vmem:[%s273 + $0x80] sm:$0xff]
        %v296 = vld [vmem:[%s273 + $0x88] sm:$0xff]
        %v297 = vld [vmem:[%s273 + $0x90] sm:$0xff]
        %v298 = vld [vmem:[%s273 + $0x98] sm:$0xff]
        %v299 = vld [vmem:[%s273 + $0xa0] sm:$0xff]
        %v300 = vld [vmem:[%s273 + $0xa8] sm:$0xff]
        %v301 = vld [vmem:[%s273 + $0xb0] sm:$0xff]
        %v302 = vld [vmem:[%s273 + $0xb8] sm:$0xff]
        %v303 = vld [vmem:[%s273 + $0xc0] sm:$0xff]
        %v304 = vld [vmem:[%s273 + $0xc8] sm:$0xff]
        %v305 = vld [vmem:[%s273 + $0xd0] sm:$0xff]
        %v306 = vld [vmem:[%s273 + $0xd8] sm:$0xff]
        %v307 = vld [vmem:[%s273 + $0xe0] sm:$0xff]
        %v308 = vld [vmem:[%s273 + $0xe8] sm:$0xff]
        %v309 = vld [vmem:[%s273 + $0xf0] sm:$0xff]
        %v310 = vld [vmem:[%s273 + $0xf8] sm:$0xff]
        %v311 = vpack.c.bf16 %v280, %v279
        %v312 = vpack.c.bf16 %v282, %v281
        %v313 = vpack.c.bf16 %v284, %v283
        %v314 = vpack.c.bf16 %v286, %v285
        %v315 = vpack.c.bf16 %v288, %v287
        %v316 = vpack.c.bf16 %v290, %v289
        %v317 = vpack.c.bf16 %v292, %v291
        %v318 = vpack.c.bf16 %v294, %v293
        %v319 = vpack.c.bf16 %v296, %v295
        %v320 = vpack.c.bf16 %v298, %v297
        %v321 = vpack.c.bf16 %v300, %v299
        %v322 = vpack.c.bf16 %v302, %v301
        %v323 = vpack.c.bf16 %v304, %v303
        %v324 = vpack.c.bf16 %v306, %v305
        %v325 = vpack.c.bf16 %v308, %v307
        %v326 = vpack.c.bf16 %v310, %v309
        %v327 = vld [vmem:[%s1] sm:$0xff]
        %v328 = vld [vmem:[%s1 + $0x8] sm:$0xf]
        %v329 = vld [vmem:[%s2] sm:$0x7]
        %v331 = vlaneseq
        %v332 = vshrl.u32 %v331, 7
        %v333 = vsub.s32 0, %v332
        %v334 = vrot.slane %v329, %v333
        %v335 = vlaneseq
        %v336 = vshrl.u32 %v335, 7
        %v337 = vsub.s32 1, %v336
        %v338 = vrot.slane %v329, %v337
        %v339 = vlaneseq
        %v340 = vshrl.u32 %v339, 7
        %v341 = vsub.s32 2, %v340
        %v342 = vrot.slane %v329, %v341
        %v348 = vunpack.c.l.b16 %v327
        %v349 = vunpack.c.h.b16 %v327
        %v350 = vunpack.c.l.b16 %v328
        %v351 = vpack.c.b16 %v348, %v348
        %v352 = vpack.c.b16 %v349, %v349
        %v353 = vpack.c.b16 %v350, %v350
        %vm354 = vcmask 64512
        %v356 = vsel %vm354, %v311, 0
        %v359 = vsel %vm354, %v312, 0
        %v362 = vsel %vm354, %v313, 0
        %v365 = vsel %vm354, %v314, 0
        %v368 = vsel %vm354, %v315, 0
        %v371 = vsel %vm354, %v316, 0
        %v374 = vsel %vm354, %v317, 0
        %v377 = vsel %vm354, %v318, 0
        %v380 = vsel %vm354, %v319, 0
        %v383 = vsel %vm354, %v320, 0
        %v386 = vsel %vm354, %v321, 0
        %v389 = vsel %vm354, %v322, 0
        %v392 = vsel %vm354, %v323, 0
        %v395 = vsel %vm354, %v324, 0
        %v398 = vsel %vm354, %v325, 0
        %v401 = vsel %vm354, %v326, 0
        %vm403 = vcmask 1043456
        %v405 = vsel %vm403, %v351, 0
        %v408 = vsel %vm403, %v352, 0
        %v411 = vsel %vm403, %v353, 0
        %413 = vmatprep.subr.bf16.mxu0 %v408
        %414 = vmatpush1.bf16.msra.mxu0 %v405
        %415 = vmatprep.subr.bf16.mxu0 0
        %416 = vmatpush1.bf16.msra.mxu0 0
        %417 = vmatprep.subr.bf16.mxu0 0
        %418 = vmatpush1.bf16.msra.mxu0 0
        %419 = vmatprep.subr.bf16.mxu0 0
        %420 = vmatpush1.bf16.msra.mxu0 0
        %421 = vmatprep.subr.bf16.mxu0 0
        %422 = vmatpush1.bf16.msra.mxu0 0
        %423 = vmatprep.subr.bf16.mxu0 0
        %424 = vmatpush1.bf16.msra.mxu0 0
        %425 = vmatprep.subr.bf16.mxu0 0
        %426 = vmatpush1.bf16.msra.mxu0 0
        %427 = vmatprep.subr.bf16.mxu0 0
        %428 = vmatpush1.bf16.msra.mxu0 0
        %429 = vmatprep.subr.bf16.mxu0 0
        %430 = vmatpush1.bf16.msra.mxu0 0
        %431 = vmatprep.subr.bf16.mxu0 0
        %432 = vmatpush1.bf16.msra.mxu0 0
        %433 = vmatprep.subr.bf16.mxu0 0
        %434 = vmatpush1.bf16.msra.mxu0 0
        %435 = vmatprep.subr.bf16.mxu0 0
        %436 = vmatpush1.bf16.msra.mxu0 0
        %437 = vmatprep.subr.bf16.mxu0 0
        %438 = vmatpush1.bf16.msra.mxu0 0
        %439 = vmatprep.subr.bf16.mxu0 0
        %440 = vmatpush1.bf16.msra.mxu0 0
        %441 = vmatprep.subr.bf16.mxu0 0
        %442 = vmatpush1.bf16.msra.mxu0 0
        %443 = vmatprep.subr.bf16.mxu0 0
        %444 = vmatpush1.bf16.msra.mxu0 0
        %445 = vmatprep.mubr.bf16.mxu0 0
        %446 = vmatmul.mubr.bf16.gmra.mrb[0].mxu0 %v356
        %v447 = vpop.f32.mrb[0].mxu0
        %v448 = vadd.f32 %v334, %v447
        %v449 = vpop.f32.mrb[0].mxu0
        %v450 = vadd.f32 %v338, %v449
        %v451 = vpop.f32.mrb[0].mxu0
        %v452 = vadd.f32 %v334, %v451
        %v453 = vpop.f32.mrb[0].mxu0
        %v454 = vadd.f32 %v338, %v453
        %455 = vmatprep.mubr.bf16.mxu0 0
        %456 = vmatmul.mubr.bf16.gmra.mrb[0].mxu0 %v359
        %v457 = vpop.f32.mrb[0].mxu0
        %v458 = vadd.f32 %v334, %v457
        %v459 = vpop.f32.mrb[0].mxu0
        %v460 = vadd.f32 %v338, %v459
        %v461 = vpop.f32.mrb[0].mxu0
        %v462 = vadd.f32 %v334, %v461
        %v463 = vpop.f32.mrb[0].mxu0
        %v464 = vadd.f32 %v338, %v463
        %465 = vmatprep.mubr.bf16.mxu0 0
        %466 = vmatmul.mubr.bf16.gmra.mrb[0].mxu0 %v362
        %v467 = vpop.f32.mrb[0].mxu0
        %v468 = vadd.f32 %v334, %v467
        %v469 = vpop.f32.mrb[0].mxu0
        %v470 = vadd.f32 %v338, %v469
        %v471 = vpop.f32.mrb[0].mxu0
        %v472 = vadd.f32 %v334, %v471
        %v473 = vpop.f32.mrb[0].mxu0
        %v474 = vadd.f32 %v338, %v473
        %475 = vmatprep.mubr.bf16.mxu0 0
        %476 = vmatmul.mubr.bf16.gmra.mrb[0].mxu0 %v365
        %v477 = vpop.f32.mrb[0].mxu0
        %v478 = vadd.f32 %v334, %v477
        %v479 = vpop.f32.mrb[0].mxu0
        %v480 = vadd.f32 %v338, %v479
        %v481 = vpop.f32.mrb[0].mxu0
        %v482 = vadd.f32 %v334, %v481
        %v483 = vpop.f32.mrb[0].mxu0
        %v484 = vadd.f32 %v338, %v483
        %485 = vmatprep.mubr.bf16.mxu0 0
        %486 = vmatmul.mubr.bf16.gmra.mrb[0].mxu0 %v368
        %v487 = vpop.f32.mrb[0].mxu0
        %v488 = vadd.f32 %v334, %v487
        %v489 = vpop.f32.mrb[0].mxu0
        %v490 = vadd.f32 %v338, %v489
        %v491 = vpop.f32.mrb[0].mxu0
        %v492 = vadd.f32 %v334, %v491
        %v493 = vpop.f32.mrb[0].mxu0
        %v494 = vadd.f32 %v338, %v493
        %495 = vmatprep.mubr.bf16.mxu0 0
        %496 = vmatmul.mubr.bf16.gmra.mrb[0].mxu0 %v371
        %v497 = vpop.f32.mrb[0].mxu0
        %v498 = vadd.f32 %v334, %v497
        %v499 = vpop.f32.mrb[0].mxu0
        %v500 = vadd.f32 %v338, %v499
        %v501 = vpop.f32.mrb[0].mxu0
        %v502 = vadd.f32 %v334, %v501
        %v503 = vpop.f32.mrb[0].mxu0
        %v504 = vadd.f32 %v338, %v503
        %505 = vmatprep.mubr.bf16.mxu0 0
        %506 = vmatmul.mubr.bf16.gmra.mrb[0].mxu0 %v374
        %v507 = vpop.f32.mrb[0].mxu0
        %v508 = vadd.f32 %v334, %v507
        %v509 = vpop.f32.mrb[0].mxu0
        %v510 = vadd.f32 %v338, %v509
        %v511 = vpop.f32.mrb[0].mxu0
        %v512 = vadd.f32 %v334, %v511
        %v513 = vpop.f32.mrb[0].mxu0
        %v514 = vadd.f32 %v338, %v513
        %515 = vmatprep.mubr.bf16.mxu0 0
        %516 = vmatmul.mubr.bf16.gmra.mrb[0].mxu0 %v377
        %v517 = vpop.f32.mrb[0].mxu0
        %v518 = vadd.f32 %v334, %v517
        %v519 = vpop.f32.mrb[0].mxu0
        %v520 = vadd.f32 %v338, %v519
        %v521 = vpop.f32.mrb[0].mxu0
        %v522 = vadd.f32 %v334, %v521
        %v523 = vpop.f32.mrb[0].mxu0
        %v524 = vadd.f32 %v338, %v523
        %525 = vmatprep.mubr.bf16.mxu0 0
        %526 = vmatmul.mubr.bf16.gmra.mrb[0].mxu0 %v380
        %v527 = vpop.f32.mrb[0].mxu0
        %v528 = vadd.f32 %v334, %v527
        %v529 = vpop.f32.mrb[0].mxu0
        %v530 = vadd.f32 %v338, %v529
        %v531 = vpop.f32.mrb[0].mxu0
        %v532 = vadd.f32 %v334, %v531
        %v533 = vpop.f32.mrb[0].mxu0
        %v534 = vadd.f32 %v338, %v533
        %535 = vmatprep.mubr.bf16.mxu0 0
        %536 = vmatmul.mubr.bf16.gmra.mrb[0].mxu0 %v383
        %v537 = vpop.f32.mrb[0].mxu0
        %v538 = vadd.f32 %v334, %v537
        %v539 = vpop.f32.mrb[0].mxu0
        %v540 = vadd.f32 %v338, %v539
        %v541 = vpop.f32.mrb[0].mxu0
        %v542 = vadd.f32 %v334, %v541
        %v543 = vpop.f32.mrb[0].mxu0
        %v544 = vadd.f32 %v338, %v543
        %545 = vmatprep.mubr.bf16.mxu0 0
        %546 = vmatmul.mubr.bf16.gmra.mrb[0].mxu0 %v386
        %v547 = vpop.f32.mrb[0].mxu0
        %v548 = vadd.f32 %v334, %v547
        %v549 = vpop.f32.mrb[0].mxu0
        %v550 = vadd.f32 %v338, %v549
        %v551 = vpop.f32.mrb[0].mxu0
        %v552 = vadd.f32 %v334, %v551
        %v553 = vpop.f32.mrb[0].mxu0
        %v554 = vadd.f32 %v338, %v553
        %555 = vmatprep.mubr.bf16.mxu0 0
        %556 = vmatmul.mubr.bf16.gmra.mrb[0].mxu0 %v389
        %v557 = vpop.f32.mrb[0].mxu0
        %v558 = vadd.f32 %v334, %v557
        %v559 = vpop.f32.mrb[0].mxu0
        %v560 = vadd.f32 %v338, %v559
        %v561 = vpop.f32.mrb[0].mxu0
        %v562 = vadd.f32 %v334, %v561
        %v563 = vpop.f32.mrb[0].mxu0
        %v564 = vadd.f32 %v338, %v563
        %565 = vmatprep.mubr.bf16.mxu0 0
        %566 = vmatmul.mubr.bf16.gmra.mrb[0].mxu0 %v392
        %v567 = vpop.f32.mrb[0].mxu0
        %v568 = vadd.f32 %v334, %v567
        %v569 = vpop.f32.mrb[0].mxu0
        %v570 = vadd.f32 %v338, %v569
        %v571 = vpop.f32.mrb[0].mxu0
        %v572 = vadd.f32 %v334, %v571
        %v573 = vpop.f32.mrb[0].mxu0
        %v574 = vadd.f32 %v338, %v573
        %575 = vmatprep.mubr.bf16.mxu0 0
        %576 = vmatmul.mubr.bf16.gmra.mrb[0].mxu0 %v395
        %v577 = vpop.f32.mrb[0].mxu0
        %v578 = vadd.f32 %v334, %v577
        %v579 = vpop.f32.mrb[0].mxu0
        %v580 = vadd.f32 %v338, %v579
        %v581 = vpop.f32.mrb[0].mxu0
        %v582 = vadd.f32 %v334, %v581
        %v583 = vpop.f32.mrb[0].mxu0
        %v584 = vadd.f32 %v338, %v583
        %585 = vmatprep.mubr.bf16.mxu0 0
        %586 = vmatmul.mubr.bf16.gmra.mrb[0].mxu0 %v398
        %v587 = vpop.f32.mrb[0].mxu0
        %v588 = vadd.f32 %v334, %v587
        %v589 = vpop.f32.mrb[0].mxu0
        %v590 = vadd.f32 %v338, %v589
        %v591 = vpop.f32.mrb[0].mxu0
        %v592 = vadd.f32 %v334, %v591
        %v593 = vpop.f32.mrb[0].mxu0
        %v594 = vadd.f32 %v338, %v593
        %595 = vmatprep.mubr.bf16.mxu0 0
        %596 = vmatmul.mubr.bf16.gmra.mrb[0].mxu0 %v401
        %v597 = vpop.f32.mrb[0].mxu0
        %v598 = vadd.f32 %v334, %v597
        %v599 = vpop.f32.mrb[0].mxu0
        %v600 = vadd.f32 %v338, %v599
        %v601 = vpop.f32.mrb[0].mxu0
        %v602 = vadd.f32 %v334, %v601
        %v603 = vpop.f32.mrb[0].mxu0
        %v604 = vadd.f32 %v338, %v603
        %605 = vdwg.mxu0
        %606 = vmatprep.subr.bf16.mxu0 0
        %607 = vmatpush1.bf16.msra.mxu0 %v411
        %608 = vmatprep.subr.bf16.mxu0 0
        %609 = vmatpush1.bf16.msra.mxu0 0
        %610 = vmatprep.subr.bf16.mxu0 0
        %611 = vmatpush1.bf16.msra.mxu0 0
        %612 = vmatprep.subr.bf16.mxu0 0
        %613 = vmatpush1.bf16.msra.mxu0 0
        %614 = vmatprep.subr.bf16.mxu0 0
        %615 = vmatpush1.bf16.msra.mxu0 0
        %616 = vmatprep.subr.bf16.mxu0 0
        %617 = vmatpush1.bf16.msra.mxu0 0
        %618 = vmatprep.subr.bf16.mxu0 0
        %619 = vmatpush1.bf16.msra.mxu0 0
        %620 = vmatprep.subr.bf16.mxu0 0
        %621 = vmatpush1.bf16.msra.mxu0 0
        %622 = vmatprep.subr.bf16.mxu0 0
        %623 = vmatpush1.bf16.msra.mxu0 0
        %624 = vmatprep.subr.bf16.mxu0 0
        %625 = vmatpush1.bf16.msra.mxu0 0
        %626 = vmatprep.subr.bf16.mxu0 0
        %627 = vmatpush1.bf16.msra.mxu0 0
        %628 = vmatprep.subr.bf16.mxu0 0
        %629 = vmatpush1.bf16.msra.mxu0 0
        %630 = vmatprep.subr.bf16.mxu0 0
        %631 = vmatpush1.bf16.msra.mxu0 0
        %632 = vmatprep.subr.bf16.mxu0 0
        %633 = vmatpush1.bf16.msra.mxu0 0
        %634 = vmatprep.subr.bf16.mxu0 0
        %635 = vmatpush1.bf16.msra.mxu0 0
        %636 = vmatprep.subr.bf16.mxu0 0
        %637 = vmatpush1.bf16.msra.mxu0 0
        %638 = vmatprep.mubr.bf16.mxu0 0
        %639 = vmatmul.mubr.bf16.gmra.mrb[0].mxu0 %v356
        %v640 = vpop.f32.mrb[0].mxu0
        %v641 = vadd.f32 %v342, %v640
        %v642 = vpop.f32.mrb[0].mxu0
        %v643 = vpop.f32.mrb[0].mxu0
        %v644 = vadd.f32 %v342, %v643
        %v645 = vpop.f32.mrb[0].mxu0
        %646 = vmatprep.mubr.bf16.mxu0 0
        %647 = vmatmul.mubr.bf16.gmra.mrb[0].mxu0 %v359
        %v648 = vpop.f32.mrb[0].mxu0
        %v649 = vadd.f32 %v342, %v648
        %v650 = vpop.f32.mrb[0].mxu0
        %v651 = vpop.f32.mrb[0].mxu0
        %v652 = vadd.f32 %v342, %v651
        %v653 = vpop.f32.mrb[0].mxu0
        %654 = vmatprep.mubr.bf16.mxu0 0
        %655 = vmatmul.mubr.bf16.gmra.mrb[0].mxu0 %v362
        %v656 = vpop.f32.mrb[0].mxu0
        %v657 = vadd.f32 %v342, %v656
        %v658 = vpop.f32.mrb[0].mxu0
        %v659 = vpop.f32.mrb[0].mxu0
        %v660 = vadd.f32 %v342, %v659
        %v661 = vpop.f32.mrb[0].mxu0
        %662 = vmatprep.mubr.bf16.mxu0 0
        %663 = vmatmul.mubr.bf16.gmra.mrb[0].mxu0 %v365
        %v664 = vpop.f32.mrb[0].mxu0
        %v665 = vadd.f32 %v342, %v664
        %v666 = vpop.f32.mrb[0].mxu0
        %v667 = vpop.f32.mrb[0].mxu0
        %v668 = vadd.f32 %v342, %v667
        %v669 = vpop.f32.mrb[0].mxu0
        %670 = vmatprep.mubr.bf16.mxu0 0
        %671 = vmatmul.mubr.bf16.gmra.mrb[0].mxu0 %v368
        %v672 = vpop.f32.mrb[0].mxu0
        %v673 = vadd.f32 %v342, %v672
        %v674 = vpop.f32.mrb[0].mxu0
        %v675 = vpop.f32.mrb[0].mxu0
        %v676 = vadd.f32 %v342, %v675
        %v677 = vpop.f32.mrb[0].mxu0
        %678 = vmatprep.mubr.bf16.mxu0 0
        %679 = vmatmul.mubr.bf16.gmra.mrb[0].mxu0 %v371
        %v680 = vpop.f32.mrb[0].mxu0
        %v681 = vadd.f32 %v342, %v680
        %v682 = vpop.f32.mrb[0].mxu0
        %v683 = vpop.f32.mrb[0].mxu0
        %v684 = vadd.f32 %v342, %v683
        %v685 = vpop.f32.mrb[0].mxu0
        %686 = vmatprep.mubr.bf16.mxu0 0
        %687 = vmatmul.mubr.bf16.gmra.mrb[0].mxu0 %v374
        %v688 = vpop.f32.mrb[0].mxu0
        %v689 = vadd.f32 %v342, %v688
        %v690 = vpop.f32.mrb[0].mxu0
        %v691 = vpop.f32.mrb[0].mxu0
        %v692 = vadd.f32 %v342, %v691
        %v693 = vpop.f32.mrb[0].mxu0
        %694 = vmatprep.mubr.bf16.mxu0 0
        %695 = vmatmul.mubr.bf16.gmra.mrb[0].mxu0 %v377
        %v696 = vpop.f32.mrb[0].mxu0
        %v697 = vadd.f32 %v342, %v696
        %v698 = vpop.f32.mrb[0].mxu0
        %v699 = vpop.f32.mrb[0].mxu0
        %v700 = vadd.f32 %v342, %v699
        %v701 = vpop.f32.mrb[0].mxu0
        %702 = vmatprep.mubr.bf16.mxu0 0
        %703 = vmatmul.mubr.bf16.gmra.mrb[0].mxu0 %v380
        %v704 = vpop.f32.mrb[0].mxu0
        %v705 = vadd.f32 %v342, %v704
        %v706 = vpop.f32.mrb[0].mxu0
        %v707 = vpop.f32.mrb[0].mxu0
        %v708 = vadd.f32 %v342, %v707
        %v709 = vpop.f32.mrb[0].mxu0
        %710 = vmatprep.mubr.bf16.mxu0 0
        %711 = vmatmul.mubr.bf16.gmra.mrb[0].mxu0 %v383
        %v712 = vpop.f32.mrb[0].mxu0
        %v713 = vadd.f32 %v342, %v712
        %v714 = vpop.f32.mrb[0].mxu0
        %v715 = vpop.f32.mrb[0].mxu0
        %v716 = vadd.f32 %v342, %v715
        %v717 = vpop.f32.mrb[0].mxu0
        %718 = vmatprep.mubr.bf16.mxu0 0
        %719 = vmatmul.mubr.bf16.gmra.mrb[0].mxu0 %v386
        %v720 = vpop.f32.mrb[0].mxu0
        %v721 = vadd.f32 %v342, %v720
        %v722 = vpop.f32.mrb[0].mxu0
        %v723 = vpop.f32.mrb[0].mxu0
        %v724 = vadd.f32 %v342, %v723
        %v725 = vpop.f32.mrb[0].mxu0
        %726 = vmatprep.mubr.bf16.mxu0 0
        %727 = vmatmul.mubr.bf16.gmra.mrb[0].mxu0 %v389
        %v728 = vpop.f32.mrb[0].mxu0
        %v729 = vadd.f32 %v342, %v728
        %v730 = vpop.f32.mrb[0].mxu0
        %v731 = vpop.f32.mrb[0].mxu0
        %v732 = vadd.f32 %v342, %v731
        %v733 = vpop.f32.mrb[0].mxu0
        %734 = vmatprep.mubr.bf16.mxu0 0
        %735 = vmatmul.mubr.bf16.gmra.mrb[0].mxu0 %v392
        %v736 = vpop.f32.mrb[0].mxu0
        %v737 = vadd.f32 %v342, %v736
        %v738 = vpop.f32.mrb[0].mxu0
        %v739 = vpop.f32.mrb[0].mxu0
        %v740 = vadd.f32 %v342, %v739
        %v741 = vpop.f32.mrb[0].mxu0
        %742 = vmatprep.mubr.bf16.mxu0 0
        %743 = vmatmul.mubr.bf16.gmra.mrb[0].mxu0 %v395
        %v744 = vpop.f32.mrb[0].mxu0
        %v745 = vadd.f32 %v342, %v744
        %v746 = vpop.f32.mrb[0].mxu0
        %v747 = vpop.f32.mrb[0].mxu0
        %v748 = vadd.f32 %v342, %v747
        %v749 = vpop.f32.mrb[0].mxu0
        %750 = vmatprep.mubr.bf16.mxu0 0
        %751 = vmatmul.mubr.bf16.gmra.mrb[0].mxu0 %v398
        %v752 = vpop.f32.mrb[0].mxu0
        %v753 = vadd.f32 %v342, %v752
        %v754 = vpop.f32.mrb[0].mxu0
        %v755 = vpop.f32.mrb[0].mxu0
        %v756 = vadd.f32 %v342, %v755
        %v757 = vpop.f32.mrb[0].mxu0
        %758 = vmatprep.mubr.bf16.mxu0 0
        %759 = vmatmul.mubr.bf16.gmra.mrb[0].mxu0 %v401
        %v760 = vpop.f32.mrb[0].mxu0
        %v761 = vadd.f32 %v342, %v760
        %v762 = vpop.f32.mrb[0].mxu0
        %v763 = vpop.f32.mrb[0].mxu0
        %v764 = vadd.f32 %v342, %v763
        %v765 = vpop.f32.mrb[0].mxu0
        %766 = vdwg.mxu0
        %v767 = vpack.c.bf16 %v452, %v448
        %v768 = vpack.c.bf16 %v462, %v458
        %v769 = vpack.c.bf16 %v472, %v468
        %v770 = vpack.c.bf16 %v482, %v478
        %v771 = vpack.c.bf16 %v492, %v488
        %v772 = vpack.c.bf16 %v502, %v498
        %v773 = vpack.c.bf16 %v512, %v508
        %v774 = vpack.c.bf16 %v522, %v518
        %v775 = vpack.c.bf16 %v532, %v528
        %v776 = vpack.c.bf16 %v542, %v538
        %v777 = vpack.c.bf16 %v552, %v548
        %v778 = vpack.c.bf16 %v562, %v558
        %v779 = vpack.c.bf16 %v572, %v568
        %v780 = vpack.c.bf16 %v582, %v578
        %v781 = vpack.c.bf16 %v592, %v588
        %v782 = vpack.c.bf16 %v602, %v598
        %v799 = vunpack.c.l.b16 %v767
        %v800 = vunpack.c.h.b16 %v767
        %v801 = vunpack.c.l.b16 %v768
        %v802 = vunpack.c.h.b16 %v768
        %v803 = vunpack.c.l.b16 %v769
        %v804 = vunpack.c.h.b16 %v769
        %v805 = vunpack.c.l.b16 %v770
        %v806 = vunpack.c.h.b16 %v770
        %v807 = vunpack.c.l.b16 %v771
        %v808 = vunpack.c.h.b16 %v771
        %v809 = vunpack.c.l.b16 %v772
        %v810 = vunpack.c.h.b16 %v772
        %v811 = vunpack.c.l.b16 %v773
        %v812 = vunpack.c.h.b16 %v773
        %v813 = vunpack.c.l.b16 %v774
        %v814 = vunpack.c.h.b16 %v774
        %v815 = vunpack.c.l.b16 %v775
        %v816 = vunpack.c.h.b16 %v775
        %v817 = vunpack.c.l.b16 %v776
        %v818 = vunpack.c.h.b16 %v776
        %v819 = vunpack.c.l.b16 %v777
        %v820 = vunpack.c.h.b16 %v777
        %v821 = vunpack.c.l.b16 %v778
        %v822 = vunpack.c.h.b16 %v778
        %v823 = vunpack.c.l.b16 %v779
        %v824 = vunpack.c.h.b16 %v779
        %v825 = vunpack.c.l.b16 %v780
        %v826 = vunpack.c.h.b16 %v780
        %v827 = vunpack.c.l.b16 %v781
        %v828 = vunpack.c.h.b16 %v781
        %v829 = vunpack.c.l.b16 %v782
        %v830 = vunpack.c.h.b16 %v782
        %v831 = vpack.c.b16 %v799, %v799
        %v832 = vpack.c.b16 %v800, %v800
        %v833 = vpack.c.b16 %v801, %v801
        %v834 = vpack.c.b16 %v802, %v802
        %v835 = vpack.c.b16 %v803, %v803
        %v836 = vpack.c.b16 %v804, %v804
        %v837 = vpack.c.b16 %v805, %v805
        %v838 = vpack.c.b16 %v806, %v806
        %v839 = vpack.c.b16 %v807, %v807
        %v840 = vpack.c.b16 %v808, %v808
        %v841 = vpack.c.b16 %v809, %v809
        %v842 = vpack.c.b16 %v810, %v810
        %v843 = vpack.c.b16 %v811, %v811
        %v844 = vpack.c.b16 %v812, %v812
        %v845 = vpack.c.b16 %v813, %v813
        %v846 = vpack.c.b16 %v814, %v814
        %v847 = vpack.c.b16 %v815, %v815
        %v848 = vpack.c.b16 %v816, %v816
        %v849 = vpack.c.b16 %v817, %v817
        %v850 = vpack.c.b16 %v818, %v818
        %v851 = vpack.c.b16 %v819, %v819
        %v852 = vpack.c.b16 %v820, %v820
        %v853 = vpack.c.b16 %v821, %v821
        %v854 = vpack.c.b16 %v822, %v822
        %v855 = vpack.c.b16 %v823, %v823
        %v856 = vpack.c.b16 %v824, %v824
        %v857 = vpack.c.b16 %v825, %v825
        %v858 = vpack.c.b16 %v826, %v826
        %v859 = vpack.c.b16 %v827, %v827
        %v860 = vpack.c.b16 %v828, %v828
        %v861 = vpack.c.b16 %v829, %v829
        %v862 = vpack.c.b16 %v830, %v830
        %895 = vst [vmem:[%s250] sm:$0xf] %v831
        %896 = vst [vmem:[%s250 + $0x4] sm:$0xf] %v832
        %897 = vst [vmem:[%s250 + $0x8] sm:$0xf] %v833
        %898 = vst [vmem:[%s250 + $0xc] sm:$0xf] %v834
        %899 = vst [vmem:[%s250 + $0x10] sm:$0xf] %v835
        %900 = vst [vmem:[%s250 + $0x14] sm:$0xf] %v836
        %901 = vst [vmem:[%s250 + $0x18] sm:$0xf] %v837
        %902 = vst [vmem:[%s250 + $0x1c] sm:$0xf] %v838
        %903 = vst [vmem:[%s250 + $0x20] sm:$0xf] %v839
        %904 = vst [vmem:[%s250 + $0x24] sm:$0xf] %v840
        %905 = vst [vmem:[%s250 + $0x28] sm:$0xf] %v841
        %906 = vst [vmem:[%s250 + $0x2c] sm:$0xf] %v842
        %907 = vst [vmem:[%s250 + $0x30] sm:$0xf] %v843
        %908 = vst [vmem:[%s250 + $0x34] sm:$0xf] %v844
        %909 = vst [vmem:[%s250 + $0x38] sm:$0xf] %v845
        %910 = vst [vmem:[%s250 + $0x3c] sm:$0xf] %v846
        %911 = vst [vmem:[%s250 + $0x40] sm:$0xf] %v847
        %912 = vst [vmem:[%s250 + $0x44] sm:$0xf] %v848
        %913 = vst [vmem:[%s250 + $0x48] sm:$0xf] %v849
        %914 = vst [vmem:[%s250 + $0x4c] sm:$0xf] %v850
        %915 = vst [vmem:[%s250 + $0x50] sm:$0xf] %v851
        %916 = vst [vmem:[%s250 + $0x54] sm:$0xf] %v852
        %917 = vst [vmem:[%s250 + $0x58] sm:$0xf] %v853
        %918 = vst [vmem:[%s250 + $0x5c] sm:$0xf] %v854
        %919 = vst [vmem:[%s250 + $0x60] sm:$0xf] %v855
        %920 = vst [vmem:[%s250 + $0x64] sm:$0xf] %v856
        %921 = vst [vmem:[%s250 + $0x68] sm:$0xf] %v857
        %922 = vst [vmem:[%s250 + $0x6c] sm:$0xf] %v858
        %923 = vst [vmem:[%s250 + $0x70] sm:$0xf] %v859
        %924 = vst [vmem:[%s250 + $0x74] sm:$0xf] %v860
        %925 = vst [vmem:[%s250 + $0x78] sm:$0xf] %v861
        %926 = vst [vmem:[%s250 + $0x7c] sm:$0xf] %v862
        %v927 = vpack.c.bf16 %v454, %v450
        %v928 = vpack.c.bf16 %v464, %v460
        %v929 = vpack.c.bf16 %v474, %v470
        %v930 = vpack.c.bf16 %v484, %v480
        %v931 = vpack.c.bf16 %v494, %v490
        %v932 = vpack.c.bf16 %v504, %v500
        %v933 = vpack.c.bf16 %v514, %v510
        %v934 = vpack.c.bf16 %v524, %v520
        %v935 = vpack.c.bf16 %v534, %v530
        %v936 = vpack.c.bf16 %v544, %v540
        %v937 = vpack.c.bf16 %v554, %v550
        %v938 = vpack.c.bf16 %v564, %v560
        %v939 = vpack.c.bf16 %v574, %v570
        %v940 = vpack.c.bf16 %v584, %v580
        %v941 = vpack.c.bf16 %v594, %v590
        %v942 = vpack.c.bf16 %v604, %v600
        %v959 = vunpack.c.l.b16 %v927
        %v960 = vunpack.c.h.b16 %v927
        %v961 = vunpack.c.l.b16 %v928
        %v962 = vunpack.c.h.b16 %v928
        %v963 = vunpack.c.l.b16 %v929
        %v964 = vunpack.c.h.b16 %v929
        %v965 = vunpack.c.l.b16 %v930
        %v966 = vunpack.c.h.b16 %v930
        %v967 = vunpack.c.l.b16 %v931
        %v968 = vunpack.c.h.b16 %v931
        %v969 = vunpack.c.l.b16 %v932
        %v970 = vunpack.c.h.b16 %v932
        %v971 = vunpack.c.l.b16 %v933
        %v972 = vunpack.c.h.b16 %v933
        %v973 = vunpack.c.l.b16 %v934
        %v974 = vunpack.c.h.b16 %v934
        %v975 = vunpack.c.l.b16 %v935
        %v976 = vunpack.c.h.b16 %v935
        %v977 = vunpack.c.l.b16 %v936
        %v978 = vunpack.c.h.b16 %v936
        %v979 = vunpack.c.l.b16 %v937
        %v980 = vunpack.c.h.b16 %v937
        %v981 = vunpack.c.l.b16 %v938
        %v982 = vunpack.c.h.b16 %v938
        %v983 = vunpack.c.l.b16 %v939
        %v984 = vunpack.c.h.b16 %v939
        %v985 = vunpack.c.l.b16 %v940
        %v986 = vunpack.c.h.b16 %v940
        %v987 = vunpack.c.l.b16 %v941
        %v988 = vunpack.c.h.b16 %v941
        %v989 = vunpack.c.l.b16 %v942
        %v990 = vunpack.c.h.b16 %v942
        %v991 = vpack.c.b16 %v959, %v959
        %v992 = vpack.c.b16 %v960, %v960
        %v993 = vpack.c.b16 %v961, %v961
        %v994 = vpack.c.b16 %v962, %v962
        %v995 = vpack.c.b16 %v963, %v963
        %v996 = vpack.c.b16 %v964, %v964
        %v997 = vpack.c.b16 %v965, %v965
        %v998 = vpack.c.b16 %v966, %v966
        %v999 = vpack.c.b16 %v967, %v967
        %v1000 = vpack.c.b16 %v968, %v968
        %v1001 = vpack.c.b16 %v969, %v969
        %v1002 = vpack.c.b16 %v970, %v970
        %v1003 = vpack.c.b16 %v971, %v971
        %v1004 = vpack.c.b16 %v972, %v972
        %v1005 = vpack.c.b16 %v973, %v973
        %v1006 = vpack.c.b16 %v974, %v974
        %v1007 = vpack.c.b16 %v975, %v975
        %v1008 = vpack.c.b16 %v976, %v976
        %v1009 = vpack.c.b16 %v977, %v977
        %v1010 = vpack.c.b16 %v978, %v978
        %v1011 = vpack.c.b16 %v979, %v979
        %v1012 = vpack.c.b16 %v980, %v980
        %v1013 = vpack.c.b16 %v981, %v981
        %v1014 = vpack.c.b16 %v982, %v982
        %v1015 = vpack.c.b16 %v983, %v983
        %v1016 = vpack.c.b16 %v984, %v984
        %v1017 = vpack.c.b16 %v985, %v985
        %v1018 = vpack.c.b16 %v986, %v986
        %v1019 = vpack.c.b16 %v987, %v987
        %v1020 = vpack.c.b16 %v988, %v988
        %v1021 = vpack.c.b16 %v989, %v989
        %v1022 = vpack.c.b16 %v990, %v990
        %1055 = vst [vmem:[%s257] sm:$0xf] %v991
        %1056 = vst [vmem:[%s257 + $0x4] sm:$0xf] %v992
        %1057 = vst [vmem:[%s257 + $0x8] sm:$0xf] %v993
        %1058 = vst [vmem:[%s257 + $0xc] sm:$0xf] %v994
        %1059 = vst [vmem:[%s257 + $0x10] sm:$0xf] %v995
        %1060 = vst [vmem:[%s257 + $0x14] sm:$0xf] %v996
        %1061 = vst [vmem:[%s257 + $0x18] sm:$0xf] %v997
        %1062 = vst [vmem:[%s257 + $0x1c] sm:$0xf] %v998
        %1063 = vst [vmem:[%s257 + $0x20] sm:$0xf] %v999
        %1064 = vst [vmem:[%s257 + $0x24] sm:$0xf] %v1000
        %1065 = vst [vmem:[%s257 + $0x28] sm:$0xf] %v1001
        %1066 = vst [vmem:[%s257 + $0x2c] sm:$0xf] %v1002
        %1067 = vst [vmem:[%s257 + $0x30] sm:$0xf] %v1003
        %1068 = vst [vmem:[%s257 + $0x34] sm:$0xf] %v1004
        %1069 = vst [vmem:[%s257 + $0x38] sm:$0xf] %v1005
        %1070 = vst [vmem:[%s257 + $0x3c] sm:$0xf] %v1006
        %1071 = vst [vmem:[%s257 + $0x40] sm:$0xf] %v1007
        %1072 = vst [vmem:[%s257 + $0x44] sm:$0xf] %v1008
        %1073 = vst [vmem:[%s257 + $0x48] sm:$0xf] %v1009
        %1074 = vst [vmem:[%s257 + $0x4c] sm:$0xf] %v1010
        %1075 = vst [vmem:[%s257 + $0x50] sm:$0xf] %v1011
        %1076 = vst [vmem:[%s257 + $0x54] sm:$0xf] %v1012
        %1077 = vst [vmem:[%s257 + $0x58] sm:$0xf] %v1013
        %1078 = vst [vmem:[%s257 + $0x5c] sm:$0xf] %v1014
        %1079 = vst [vmem:[%s257 + $0x60] sm:$0xf] %v1015
        %1080 = vst [vmem:[%s257 + $0x64] sm:$0xf] %v1016
        %1081 = vst [vmem:[%s257 + $0x68] sm:$0xf] %v1017
        %1082 = vst [vmem:[%s257 + $0x6c] sm:$0xf] %v1018
        %1083 = vst [vmem:[%s257 + $0x70] sm:$0xf] %v1019
        %1084 = vst [vmem:[%s257 + $0x74] sm:$0xf] %v1020
        %1085 = vst [vmem:[%s257 + $0x78] sm:$0xf] %v1021
        %1086 = vst [vmem:[%s257 + $0x7c] sm:$0xf] %v1022
        %v1087 = vpack.c.bf16 %v644, %v641
        %v1088 = vpack.c.bf16 %v652, %v649
        %v1089 = vpack.c.bf16 %v660, %v657
        %v1090 = vpack.c.bf16 %v668, %v665
        %v1091 = vpack.c.bf16 %v676, %v673
        %v1092 = vpack.c.bf16 %v684, %v681
        %v1093 = vpack.c.bf16 %v692, %v689
        %v1094 = vpack.c.bf16 %v700, %v697
        %v1095 = vpack.c.bf16 %v708, %v705
        %v1096 = vpack.c.bf16 %v716, %v713
        %v1097 = vpack.c.bf16 %v724, %v721
        %v1098 = vpack.c.bf16 %v732, %v729
        %v1099 = vpack.c.bf16 %v740, %v737
        %v1100 = vpack.c.bf16 %v748, %v745
        %v1101 = vpack.c.bf16 %v756, %v753
        %v1102 = vpack.c.bf16 %v764, %v761
        %v1119 = vunpack.c.l.b16 %v1087
        %v1120 = vunpack.c.h.b16 %v1087
        %v1121 = vunpack.c.l.b16 %v1088
        %v1122 = vunpack.c.h.b16 %v1088
        %v1123 = vunpack.c.l.b16 %v1089
        %v1124 = vunpack.c.h.b16 %v1089
        %v1125 = vunpack.c.l.b16 %v1090
        %v1126 = vunpack.c.h.b16 %v1090
        %v1127 = vunpack.c.l.b16 %v1091
        %v1128 = vunpack.c.h.b16 %v1091
        %v1129 = vunpack.c.l.b16 %v1092
        %v1130 = vunpack.c.h.b16 %v1092
        %v1131 = vunpack.c.l.b16 %v1093
        %v1132 = vunpack.c.h.b16 %v1093
        %v1133 = vunpack.c.l.b16 %v1094
        %v1134 = vunpack.c.h.b16 %v1094
        %v1135 = vunpack.c.l.b16 %v1095
        %v1136 = vunpack.c.h.b16 %v1095
        %v1137 = vunpack.c.l.b16 %v1096
        %v1138 = vunpack.c.h.b16 %v1096
        %v1139 = vunpack.c.l.b16 %v1097
        %v1140 = vunpack.c.h.b16 %v1097
        %v1141 = vunpack.c.l.b16 %v1098
        %v1142 = vunpack.c.h.b16 %v1098
        %v1143 = vunpack.c.l.b16 %v1099
        %v1144 = vunpack.c.h.b16 %v1099
        %v1145 = vunpack.c.l.b16 %v1100
        %v1146 = vunpack.c.h.b16 %v1100
        %v1147 = vunpack.c.l.b16 %v1101
        %v1148 = vunpack.c.h.b16 %v1101
        %v1149 = vunpack.c.l.b16 %v1102
        %v1150 = vunpack.c.h.b16 %v1102
        %v1151 = vpack.c.b16 %v1119, %v1119
        %v1152 = vpack.c.b16 %v1120, %v1120
        %v1153 = vpack.c.b16 %v1121, %v1121
        %v1154 = vpack.c.b16 %v1122, %v1122
        %v1155 = vpack.c.b16 %v1123, %v1123
        %v1156 = vpack.c.b16 %v1124, %v1124
        %v1157 = vpack.c.b16 %v1125, %v1125
        %v1158 = vpack.c.b16 %v1126, %v1126
        %v1159 = vpack.c.b16 %v1127, %v1127
        %v1160 = vpack.c.b16 %v1128, %v1128
        %v1161 = vpack.c.b16 %v1129, %v1129
        %v1162 = vpack.c.b16 %v1130, %v1130
        %v1163 = vpack.c.b16 %v1131, %v1131
        %v1164 = vpack.c.b16 %v1132, %v1132
        %v1165 = vpack.c.b16 %v1133, %v1133
        %v1166 = vpack.c.b16 %v1134, %v1134
        %v1167 = vpack.c.b16 %v1135, %v1135
        %v1168 = vpack.c.b16 %v1136, %v1136
        %v1169 = vpack.c.b16 %v1137, %v1137
        %v1170 = vpack.c.b16 %v1138, %v1138
        %v1171 = vpack.c.b16 %v1139, %v1139
        %v1172 = vpack.c.b16 %v1140, %v1140
        %v1173 = vpack.c.b16 %v1141, %v1141
        %v1174 = vpack.c.b16 %v1142, %v1142
        %v1175 = vpack.c.b16 %v1143, %v1143
        %v1176 = vpack.c.b16 %v1144, %v1144
        %v1177 = vpack.c.b16 %v1145, %v1145
        %v1178 = vpack.c.b16 %v1146, %v1146
        %v1179 = vpack.c.b16 %v1147, %v1147
        %v1180 = vpack.c.b16 %v1148, %v1148
        %v1181 = vpack.c.b16 %v1149, %v1149
        %v1182 = vpack.c.b16 %v1150, %v1150
        %1215 = vst [vmem:[%s264] sm:$0xf] %v1151
        %1216 = vst [vmem:[%s264 + $0x4] sm:$0xf] %v1152
        %1217 = vst [vmem:[%s264 + $0x8] sm:$0xf] %v1153
        %1218 = vst [vmem:[%s264 + $0xc] sm:$0xf] %v1154
        %1219 = vst [vmem:[%s264 + $0x10] sm:$0xf] %v1155
        %1220 = vst [vmem:[%s264 + $0x14] sm:$0xf] %v1156
        %1221 = vst [vmem:[%s264 + $0x18] sm:$0xf] %v1157
        %1222 = vst [vmem:[%s264 + $0x1c] sm:$0xf] %v1158
        %1223 = vst [vmem:[%s264 + $0x20] sm:$0xf] %v1159
        %1224 = vst [vmem:[%s264 + $0x24] sm:$0xf] %v1160
        %1225 = vst [vmem:[%s264 + $0x28] sm:$0xf] %v1161
        %1226 = vst [vmem:[%s264 + $0x2c] sm:$0xf] %v1162
        %1227 = vst [vmem:[%s264 + $0x30] sm:$0xf] %v1163
        %1228 = vst [vmem:[%s264 + $0x34] sm:$0xf] %v1164
        %1229 = vst [vmem:[%s264 + $0x38] sm:$0xf] %v1165
        %1230 = vst [vmem:[%s264 + $0x3c] sm:$0xf] %v1166
        %1231 = vst [vmem:[%s264 + $0x40] sm:$0xf] %v1167
        %1232 = vst [vmem:[%s264 + $0x44] sm:$0xf] %v1168
        %1233 = vst [vmem:[%s264 + $0x48] sm:$0xf] %v1169
        %1234 = vst [vmem:[%s264 + $0x4c] sm:$0xf] %v1170
        %1235 = vst [vmem:[%s264 + $0x50] sm:$0xf] %v1171
        %1236 = vst [vmem:[%s264 + $0x54] sm:$0xf] %v1172
        %1237 = vst [vmem:[%s264 + $0x58] sm:$0xf] %v1173
        %1238 = vst [vmem:[%s264 + $0x5c] sm:$0xf] %v1174
        %1239 = vst [vmem:[%s264 + $0x60] sm:$0xf] %v1175
        %1240 = vst [vmem:[%s264 + $0x64] sm:$0xf] %v1176
        %1241 = vst [vmem:[%s264 + $0x68] sm:$0xf] %v1177
        %1242 = vst [vmem:[%s264 + $0x6c] sm:$0xf] %v1178
        %1243 = vst [vmem:[%s264 + $0x70] sm:$0xf] %v1179
        %1244 = vst [vmem:[%s264 + $0x74] sm:$0xf] %v1180
        %1245 = vst [vmem:[%s264 + $0x78] sm:$0xf] %v1181
        %1246 = vst [vmem:[%s264 + $0x7c] sm:$0xf] %v1182
        %s1247 = sand.u32 %s115, 1
        %s1248 = scalar_lea.sflag [#allocation3], %s1247
        %s1249 = sand.u32 %s115, 1
        %s1250 = smul.addr %s1249, 128
        %s1251 = scalar_lea.vmem [#allocation2], %s1250
        %s1252 = sand.u32 %s23, 1
        %s1253 = scalar_lea.sflag [#allocation5], %s1252
        %s1254 = sand.u32 %s143, 1
        %s1255 = smul.addr %s1254, 128
        %s1256 = scalar_lea.vmem [#allocation4], %s1255
        %s1257 = sand.u32 %s23, 1
        %s1258 = scalar_lea.sflag [#allocation5], %s1257
        %s1259 = sand.u32 %s171, 1
        %s1260 = smul.addr %s1259, 128
        %s1261 = scalar_lea.vmem [#allocation6], %s1260
        // Predicated region
        $region33: #{tpu_custom_call.1} parent=31 // pred_check
          %p1262 = pneg %p125
        $region34: #{tpu_custom_call.1} parent=31 // pred_check_branch
          %1264 = sbr.rel (%p1262) target = $region36
        $region35: #{tpu_custom_call.1} parent=31 // pred_region
          %s1265 = smul.u32 32, %s28
          %s1267 = ssub.s32 2048, 2048
          %1268 = vsyncadd %s1248, %s1267
          %s1269 = smul.addr %s27, 32
          %s1270 = sadd.s32 %s1265, %s1269
          %s1271 = smul.addr %s1270, 64
          %s1272 = scalar_lea.hbm %s3, %s1271
          %s1273 = sshll.u32 %s1251, 4
          %s1274 = int_to_ptr.vmem [resolvable:$true] %s1273
          %1279 = dma.vmem_to_hbm [thread:$0]  %s1274, 2048, %s1272, %s1248, 64, 64, 4
        $region36: #{tpu_custom_call.1} parent=31 // pred_fallthru
          _
        // Predicated region
        $region37: #{tpu_custom_call.1} parent=31 // pred_check
          %p1280 = pneg %p153
        $region38: #{tpu_custom_call.1} parent=31 // pred_check_branch
          %1282 = sbr.rel (%p1280) target = $region40
        $region39: #{tpu_custom_call.1} parent=31 // pred_region
          %s1283 = smul.u32 32, %s28
          %s1285 = ssub.s32 2048, 2048
          %1286 = vsyncadd %s1253, %s1285
          %s1287 = smul.addr %s27, 32
          %s1288 = sadd.s32 %s1283, %s1287
          %s1289 = smul.addr %s1288, 64
          %s1290 = scalar_lea.hbm %s4, %s1289
          %s1291 = sshll.u32 %s1256, 4
          %s1292 = int_to_ptr.vmem [resolvable:$true] %s1291
          %1297 = dma.vmem_to_hbm [thread:$0]  %s1292, 2048, %s1290, %s1253, 64, 64, 4
        $region40: #{tpu_custom_call.1} parent=31 // pred_fallthru
          _
        // Predicated region
        $region41: #{tpu_custom_call.1} parent=31 // pred_check
          %p1298 = pneg %p181
        $region42: #{tpu_custom_call.1} parent=31 // pred_check_branch
          %1300 = sbr.rel (%p1298) target = $region44
        $region43: #{tpu_custom_call.1} parent=31 // pred_region
          %s1301 = smul.u32 32, %s28
          %s1303 = ssub.s32 2048, 2048
          %1304 = vsyncadd %s1258, %s1303
          %s1305 = smul.addr %s27, 32
          %s1306 = sadd.s32 %s1301, %s1305
          %s1307 = smul.addr %s1306, 64
          %s1308 = scalar_lea.hbm %s5, %s1307
          %s1309 = sshll.u32 %s1261, 4
          %s1310 = int_to_ptr.vmem [resolvable:$true] %s1309
          %1315 = dma.vmem_to_hbm [thread:$0]  %s1310, 2048, %s1308, %s1258, 64, 64, 4
        $region44: #{tpu_custom_call.1} parent=31 // pred_fallthru
          _
      $region32: #{tpu_custom_call.1} parent=5 // pred_fallthru
        _
      %p1316 = scmp.le.s32.totalorder 2, %s18
      // Predicated region
      $region45: #{tpu_custom_call.1} parent=5 // pred_check
        %p1317 = pneg %p1316
      $region46: #{tpu_custom_call.1} parent=5 // pred_check_branch
        %1319 = sbr.rel (%p1317) target = $region48
      $region47: #{tpu_custom_call.1} parent=5 // pred_region
        %s1320 = ssub.s32 %s18, 2
        // Predicated region
        $region49: #{tpu_custom_call.1} parent=47 // pred_check
          %p1321 = pneg %p131
        $region50: #{tpu_custom_call.1} parent=47 // pred_check_branch
          %1323 = sbr.rel (%p1321) target = $region52
        $region51: #{tpu_custom_call.1} parent=47 // pred_region
          %s1324 = sand.u32 %s116, 1
          %s1325 = scalar_lea.sflag [#allocation3], %s1324
          %s1326 = sand.u32 %s116, 1
          %s1327 = smul.addr %s1326, 128
          %s1328 = scalar_lea.vmem [#allocation2], %s1327
          %1329 = dma.done %s1325, 2048
        $region52: #{tpu_custom_call.1} parent=47 // pred_fallthru
          _
        // Predicated region
        $region53: #{tpu_custom_call.1} parent=47 // pred_check
          %p1330 = pneg %p159
        $region54: #{tpu_custom_call.1} parent=47 // pred_check_branch
          %1332 = sbr.rel (%p1330) target = $region56
        $region55: #{tpu_custom_call.1} parent=47 // pred_region
          %s1333 = sand.u32 %s24, 1
          %s1334 = scalar_lea.sflag [#allocation5], %s1333
          %s1335 = sand.u32 %s144, 1
          %s1336 = smul.addr %s1335, 128
          %s1337 = scalar_lea.vmem [#allocation4], %s1336
          %1338 = dma.done %s1334, 2048
        $region56: #{tpu_custom_call.1} parent=47 // pred_fallthru
          _
        // Predicated region
        $region57: #{tpu_custom_call.1} parent=47 // pred_check
          %p1339 = pneg %p187
        $region58: #{tpu_custom_call.1} parent=47 // pred_check_branch
          %1341 = sbr.rel (%p1339) target = $region60
        $region59: #{tpu_custom_call.1} parent=47 // pred_region
          %s1342 = sand.u32 %s24, 1
          %s1343 = scalar_lea.sflag [#allocation5], %s1342
          %s1344 = sand.u32 %s172, 1
          %s1345 = smul.addr %s1344, 128
          %s1346 = scalar_lea.vmem [#allocation6], %s1345
          %1347 = dma.done %s1343, 2048
        $region60: #{tpu_custom_call.1} parent=47 // pred_fallthru
          _
      $region48: #{tpu_custom_call.1} parent=5 // pred_fallthru
        _
    $region6: #{tpu_custom_call.1} parent=1 // loop_footer
      %s22 = sadd.s32 1, %s18
    $region7: #{tpu_custom_call.1} parent=1 // loop_footer_branch
      %17 = sbr.rel target = $region3
    $region8: #{tpu_custom_call.1} parent=1 // loop_exit
      _
    %1348 = vsyncpa [#allocation3], 1
    %s1349 = scalar_lea.sflag [#allocation3], 1
    %1350 = vsyncpa %s1349, 1
    %1351 = vsyncpa [#allocation5], 1
    %s1352 = scalar_lea.sflag [#allocation5], 1
    %1353 = vsyncpa %s1352, 1

</llo_original>
